<compile_context>
chip_gen: v5e
topology: v5e:2x2
jax: 0.10.0
libtpu: 0.0.40
codegen_flags: <defaults>
</compile_context>

<pallas_src>
import functools

import jax
import jax.numpy as jnp
import numpy as np
from jax.experimental import pallas as pl
from jax.experimental.pallas import tpu as pltpu

_EPS = 1e-5


@functools.lru_cache(maxsize=None)
def _roll_backward_shift(length):
    """Static shift s such that pltpu.roll(x, s, axis=0)[p] == x[p - 1].

    pltpu.roll is documented to match jnp.roll, but if the sign convention
    ever differed the conv's left/right taps would silently mirror, so probe
    the convention once with a tiny kernel and pick the backward (p-1) shift.
    """
    def probe(x_ref, o_ref):
        o_ref[...] = pltpu.roll(x_ref[...], 1, axis=0)

    x = jnp.broadcast_to(jnp.arange(8, dtype=jnp.float32)[:, None], (8, 128))
    y = pl.pallas_call(
        probe, out_shape=jax.ShapeDtypeStruct((8, 128), jnp.float32))(x)
    y = jax.block_until_ready(y)
    jnp_like = float(y[1, 0]) == 0.0          # jnp.roll(x, 1)[1] == x[0]
    return 1 if jnp_like else length - 1


def _layer_kernel(xconv_ref, wh_ref, h0_ref, gamma_ref, beta_ref, out_ref,
                  hstate_ref, him_ref, acc_ref, *, n, h, w, hid, seq_len,
                  sh_back, sh_fwd):
    """Whole seq_len recurrence of one convRNNcell layer (grid=(1,)).

    xconv_ref : (R, 2*hid)        precomputed x-channel conv contribution
    wh_ref    : (9*hid, 2*hid)    h-channel conv weights, tap-major rows
    h0_ref    : (R, hid)          initial hidden state for this layer
    out_ref   : (R, hid)          final hidden state after seq_len steps
    hstate_ref: (N*(H+2)*W, hid)  resident h, W zero rows above/below each img
    him_ref   : (H*W, 9*hid)      per-image im2col of h for the fused matmul
    acc_ref   : (R, 2*hid)        pre-BN conv output (between BN passes)
    """
    hw = h * w
    hp_rows = (h + 2) * w       # rows per image incl. top/bottom zero bands
    rows = n * hw
    c2 = 2 * hid
    inv_rows = 1.0 / rows

    # Seed the resident padded hidden state; the pad bands stay zero forever.
    hstate_ref[...] = jnp.zeros_like(hstate_ref)
    for i in range(n):
        hstate_ref[pl.ds(i * hp_rows + w, hw), :] = h0_ref[pl.ds(i * hw, hw), :]

    @pl.loop(0, seq_len)
    def _step(t):
        del t
        # Edge validity masks from the flattened x coordinate (row mod W).
        iota = jax.lax.broadcasted_iota(jnp.int32, (hw, hid), 0)
        xcoord = (iota & (w - 1)) if (w & (w - 1)) == 0 else (iota % w)
        mask_l = xcoord != 0            # left-neighbour tap valid  (x > 0)
        mask_r = xcoord != (w - 1)      # right-neighbour tap valid (x < W-1)

        s1 = jnp.zeros((1, c2), jnp.float32)
        s2 = jnp.zeros((1, c2), jnp.float32)

        # Pass 1: fused 3x3 conv over h -- one K=9*hid MXU matmul per image,
        # plus the precomputed x contribution; accumulate BN partial sums.
        for i in range(n):
            for dy in range(3):
                base = hstate_ref[pl.ds(i * hp_rows + dy * w, hw), :]
                tap = dy * 3
                him_ref[:, (tap + 1) * hid:(tap + 2) * hid] = base  # dx = 1
                him_ref[:, tap * hid:(tap + 1) * hid] = jnp.where(  # dx = 0
                    mask_l, pltpu.roll(base, sh_back, axis=0), 0.0)
                him_ref[:, (tap + 2) * hid:(tap + 3) * hid] = jnp.where(
                    mask_r, pltpu.roll(base, sh_fwd, axis=0), 0.0)  # dx = 2
            acc_i = xconv_ref[pl.ds(i * hw, hw), :] + jnp.dot(
                him_ref[...], wh_ref[...], preferred_element_type=jnp.float32)
            acc_ref[pl.ds(i * hw, hw), :] = acc_i
            s1 = s1 + jnp.sum(acc_i, axis=0, keepdims=True)
            s2 = s2 + jnp.sum(acc_i * acc_i, axis=0, keepdims=True)
        # NOTE: the conv bias is omitted on purpose: training-mode BatchNorm
        # subtracts the batch mean, which cancels a per-channel bias exactly.

        # BatchNorm2d (training mode): batch stats over (N, H, W), biased var.
        mean = s1 * inv_rows
        var = jnp.maximum(s2 * inv_rows - mean * mean, 0.0)
        scale = gamma_ref[...] * jax.lax.rsqrt(var + _EPS)
        shift = beta_ref[...] - mean * scale

        # Pass 2: normalize, combine (ccx, cch) halves, tanh, write h back.
        for i in range(n):
            normed = acc_ref[pl.ds(i * hw, hw), :] * scale + shift
            ht_i = jnp.tanh(normed[:, :hid] + normed[:, hid:])
            hstate_ref[pl.ds(i * hp_rows + w, hw), :] = ht_i

    for i in range(n):
        out_ref[pl.ds(i * hw, hw), :] = hstate_ref[pl.ds(i * hp_rows + w, hw), :]


def _layer_recurrence(xconv, wh9, h0, gamma, beta, *, n, h, w, hid, seq_len):
    hw = h * w
    rows = n * hw
    c2 = 2 * hid
    hp_rows = (h + 2) * w
    sh_back = _roll_backward_shift(hw)      # roll shift implementing p -> p-1
    sh_fwd = (hw - sh_back) % hw            # roll shift implementing p -> p+1

    kernel = functools.partial(
        _layer_kernel, n=n, h=h, w=w, hid=hid, seq_len=seq_len,
        sh_back=sh_back, sh_fwd=sh_fwd)

    # Size the VMEM limit from the actual footprint (double-buffered in/out +
    # resident scratch) instead of a blanket cap.
    fb = 4
    io_bytes = fb * (rows * c2 + 9 * hid * c2 + rows * hid + 2 * c2 + rows * hid)
    scratch_bytes = fb * (n * hp_rows * hid + hw * 9 * hid + rows * c2)
    vmem_limit = int(min(2 * io_bytes + scratch_bytes + (8 << 20), 96 << 20))

    return pl.pallas_call(
        kernel,
        out_shape=jax.ShapeDtypeStruct((rows, hid), jnp.float32),
        grid_spec=pltpu.PrefetchScalarGridSpec(
            num_scalar_prefetch=0,
            grid=(1,),
            in_specs=[
                pl.BlockSpec((rows, c2), lambda t: (0, 0)),       # xconv
                pl.BlockSpec((9 * hid, c2), lambda t: (0, 0)),    # wh (fused K)
                pl.BlockSpec((rows, hid), lambda t: (0, 0)),      # h0
                pl.BlockSpec((1, c2), lambda t: (0, 0)),          # gamma
                pl.BlockSpec((1, c2), lambda t: (0, 0)),          # beta
            ],
            out_specs=pl.BlockSpec((rows, hid), lambda t: (0, 0)),
            scratch_shapes=[
                pltpu.VMEM((n * hp_rows, hid), jnp.float32),  # padded resident h
                pltpu.VMEM((hw, 9 * hid), jnp.float32),       # per-image h im2col
                pltpu.VMEM((rows, c2), jnp.float32),          # pre-BN conv output
            ],
        ),
        compiler_params=pltpu.CompilerParams(
            dimension_semantics=("arbitrary",),
            vmem_limit_bytes=vmem_limit,
        ),
    )(xconv, wh9, h0, gamma, beta)


# --------------------------- plain-JAX glue ---------------------------------
def _im2col(x_nhwc):
    """(N,H,W,C) -> (N*H*W, 9*C), tap order (dy, dx) row-major."""
    n, h, w, c = x_nhwc.shape
    pad = jnp.pad(x_nhwc, ((0, 0), (1, 1), (1, 1), (0, 0)))
    taps = [pad[:, dy:dy + h, dx:dx + w, :]
            for dy in range(3) for dx in range(3)]
    return jnp.concatenate(taps, axis=-1).reshape(n * h * w, 9 * c)


def _pack_layer(w_hwio, gamma, beta, cin, hid):
    c2 = 2 * hid
    wx = w_hwio[:, :, :cin, :].reshape(9 * cin, c2)    # ((dy*3+dx)*cin+c, o)
    wh9 = w_hwio[:, :, cin:, :].reshape(9 * hid, c2)   # ((dy*3+dx)*hid+c, o)
    return wx, wh9, gamma.reshape(1, c2), beta.reshape(1, c2)


def init_params(key, in_size, hid_size, layers):
    """Deterministic per-layer params: (w_hwio, bias, gamma, beta)."""
    c = in_size + hid_size
    bound = 1.0 / np.sqrt(c * 9)  # PyTorch Conv2d default uniform bound
    params = []
    for i in range(layers):
        k = jax.random.fold_in(key, i)
        k1, k2 = jax.random.split(k)
        w_hwio = jax.random.uniform(k1, (3, 3, c, 2 * hid_size), jnp.float32,
                                    -bound, bound)
        bias = jax.random.uniform(k2, (2 * hid_size,), jnp.float32,
                                  -bound, bound)
        gamma = jnp.ones((2 * hid_size,), jnp.float32)
        beta = jnp.zeros((2 * hid_size,), jnp.float32)
        params.append((w_hwio, bias, gamma, beta))
    return params


def _forward_impl(img_nchw, params, hid_size, layers, seq_len):
    """Matches convRNN.forward: xt is the raw input image for every layer;
    layer i's recurrence is seeded with layer i-1's final hidden state."""
    x = jnp.transpose(img_nchw, (0, 2, 3, 1)).astype(jnp.float32)  # NCHW->NHWC
    n, h, w, cin = x.shape
    rows = n * h * w
    xpat = _im2col(x)                         # same image feeds every layer
    ht = jnp.zeros((rows, hid_size), jnp.float32)
    for i in range(layers):
        w_hwio, _bias, gamma, beta = params[i]  # bias cancelled by train-mode BN
        wx, wh9, g2, b2 = _pack_layer(w_hwio, gamma, beta, cin, hid_size)
        # x contribution of the conv is constant across the recurrence: do the
        # K=9*cin matmul once per layer outside the kernel (XLA fuses it).
        xconv = jnp.dot(xpat, wx, preferred_element_type=jnp.float32)
        ht = _layer_recurrence(xconv, wh9, ht, g2, b2, n=n, h=h, w=w,
                               hid=hid_size, seq_len=seq_len)
    out = ht.reshape(n, h, w, hid_size)
    return jnp.transpose(out, (0, 3, 1, 2))    # back to NCHW (N, hid, H, W)


_conv_rnn_forward_jit = jax.jit(_forward_impl, static_argnums=(2, 3, 4))


def conv_rnn_forward(img, params, hid_size, layers, seq_len):
    # Run the (cached) pltpu.roll convention probe outside the jit trace.
    _roll_backward_shift(img.shape[2] * img.shape[3])
    return _conv_rnn_forward_jit(img, params, hid_size, layers, seq_len)


# ---- pure-JAX reference (correctness check only) ----------------------------
def _reference_forward(img_nchw, params, hid_size, layers, seq_len):
    x = jnp.transpose(img_nchw, (0, 2, 3, 1)).astype(jnp.float32)
    n, h, w, _ = x.shape

    def cell(xt, ht, w_hwio, bias, gamma, beta):
        cat = jnp.concatenate([xt, ht], axis=-1)
        conv = jax.lax.conv_general_dilated(
            cat, w_hwio, (1, 1), "SAME",
            dimension_numbers=("NHWC", "HWIO", "NHWC")) + bias
        mean = jnp.mean(conv, axis=(0, 1, 2), keepdims=True)
        var = jnp.mean(jnp.square(conv - mean), axis=(0, 1, 2), keepdims=True)
        norm = (conv - mean) * jax.lax.rsqrt(var + _EPS) * gamma + beta
        return jnp.tanh(norm[..., :hid_size] + norm[..., hid_size:])

    state = jnp.zeros((n, h, w, hid_size), jnp.float32)
    ht = state
    for i in range(layers):
        w_hwio, bias, gamma, beta = params[i]
        ht = state
        for _ in range(seq_len):
            ht = cell(x, ht, w_hwio, bias, gamma, beta)
        state = ht
    return jnp.transpose(ht, (0, 3, 1, 2))


if __name__ == "__main__":
    key = jax.random.PRNGKey(0)
    N, Cin, H, W = 2, 4, 16, 16           # img: (batch, inSize, height, width)
    hid_size, layers, seq_len = 64, 2, 8  # 2*hid = 128 -> lane-dense conv/BN

    k_img, k_par = jax.random.split(key)
    img = jax.random.normal(k_img, (N, Cin, H, W), jnp.float32)
    params = init_params(k_par, Cin, hid_size, layers)

    out = conv_rnn_forward(img, params, hid_size, layers, seq_len)
    out = jax.block_until_ready(out)
    assert out.shape == (N, hid_size, H, W)

    ref = _reference_forward(img, params, hid_size, layers, seq_len)
    np.testing.assert_allclose(np.asarray(out), np.asarray(ref),
                               atol=2e-3, rtol=2e-3)
    print("KERNEL_OK")
</pallas_src>

<mosaic_0001>
module attributes {stable_mosaic.version = 11 : i64} {
  func.func @probe(%arg0: memref<8x128xf32, #tpu.memory_space<vmem>>, %arg1: memref<8x128xf32, #tpu.memory_space<vmem>>) attributes {dimension_semantics = [], scalar_prefetch = 0 : i64, scratch_operands = 0 : i64, tpu.core_type = #tpu.core_type<tc>} {
    %c0 = arith.constant 0 : index
    %c0_0 = arith.constant 0 : index
    %0 = vector.load %arg0[%c0, %c0_0] : memref<8x128xf32, #tpu.memory_space<vmem>>, vector<8x128xf32>
    %c1_i32 = arith.constant 1 : i32
    %1 = tpu.dynamic_rotate %0 by %c1_i32 dim 0 : vector<8x128xf32>, i32 -> vector<8x128xf32>
    %c0_1 = arith.constant 0 : index
    %c0_2 = arith.constant 0 : index
    %2 = vector.load %arg1[%c0_1, %c0_2] : memref<8x128xf32, #tpu.memory_space<vmem>>, vector<8x128xf32>
    tpu.vector_store %arg1[%c0_1, %c0_2], %1 {strides = array<i32>} : memref<8x128xf32, #tpu.memory_space<vmem>>, vector<8x128xf32>,
    return
  }
}

</mosaic_0001>

<llo_original>
// kernel: tpu_custom_call.1
$region0: #{tpu_custom_call.1}
  #allocation0 [shape = 'u32[]', space=smem, size = 0x4, offset = 0x4, fixed_abs, tag = 'smem constant byte address 0x4 - core index']
  #allocation1 [shape = 'u32[72,128]{1,0:T(1,128)}', space=vmem, size = 0x9000, scoped, tag = 'internal scratch']
  %s0 = inlined_call_operand.hbm [shape: f32[8,128], index: 0, kind: input, shape index: {}]
  %s1 = inlined_call_operand.hbm [shape: f32[8,128], index: 1, kind: output, shape index: {}]
  %s2 = sld [smem:[#allocation0]]
  $region18: #{tpu_custom_call.1} parent=0
    _
  %s4 = ssub.s32 1, %s2
  %s5 = scalar_select 0, %s4, %s2
  $region1: #{tpu_custom_call.1} parent=0
    #allocation2 [shape = 'u8[4096]{0}', space=vmem, size = 0x1000, scoped, tag = 'input window, operand 0, single buffered']
    #allocation3 [shape = 's32[1]{0}', space=sflag, size = 0x4, scoped, tag = 'scoped memory for tpu_custom_call.1']
    #allocation4 [shape = 's32[1]{0}', space=sflag, size = 0x4, scoped, tag = 'scoped memory for tpu_custom_call.1']
    #allocation5 [shape = 'u8[4096]{0}', space=vmem, size = 0x1000, scoped, tag = 'output window, operand 0, single buffered']
    %6 = vsyncpa [#allocation3], 0
    %7 = vsyncpa [#allocation4], 0
    // Predicated region
    $region2: #{tpu_custom_call.1} parent=1 // pred_check
      _
    $region3: #{tpu_custom_call.1} parent=1 // pred_check_branch
      %9 = sbr.rel (0) target = $region5
    $region4: #{tpu_custom_call.1} parent=1 // pred_region
      %11 = vsyncadd [#allocation3], 0
      %s13 = sshll.u32 %s0, 4
      %s14 = int_to_ptr.hbm [resolvable:$true] %s13
      %s15 = sshll.u32 [#allocation2], 4
      %s16 = int_to_ptr.vmem [resolvable:$true] %s15
      %18 = dma.hbm_to_vmem [thread:$0]  %s14, 128, %s16, [#allocation3]
    $region5: #{tpu_custom_call.1} parent=1 // pred_fallthru
      _
    // Predicated region
    $region6: #{tpu_custom_call.1} parent=1 // pred_check
      _
    $region7: #{tpu_custom_call.1} parent=1 // pred_check_branch
      %20 = sbr.rel (0) target = $region9
    $region8: #{tpu_custom_call.1} parent=1 // pred_region
      %22 = dma.done [#allocation3], 128
    $region9: #{tpu_custom_call.1} parent=1 // pred_fallthru
      _
    %v23 = vld [vmem:[#allocation2] sm:$0xff]
    %v24 = vrot.slane %v23, 7
    %25 = vst [vmem:[#allocation5] sm:$0xff] %v24
    // Predicated region
    $region10: #{tpu_custom_call.1} parent=1 // pred_check
      _
    $region11: #{tpu_custom_call.1} parent=1 // pred_check_branch
      %27 = sbr.rel (0) target = $region13
    $region12: #{tpu_custom_call.1} parent=1 // pred_region
      %29 = vsyncadd [#allocation4], 0
      %s31 = sshll.u32 [#allocation5], 4
      %s32 = int_to_ptr.vmem [resolvable:$true] %s31
      %s33 = sshll.u32 %s1, 4
      %s34 = int_to_ptr.hbm [resolvable:$true] %s33
      %36 = dma.vmem_to_hbm [thread:$0]  %s32, 128, %s34, [#allocation4]
    $region13: #{tpu_custom_call.1} parent=1 // pred_fallthru
      _
    // Predicated region
    $region14: #{tpu_custom_call.1} parent=1 // pred_check
      _
    $region15: #{tpu_custom_call.1} parent=1 // pred_check_branch
      %38 = sbr.rel (0) target = $region17
    $region16: #{tpu_custom_call.1} parent=1 // pred_region
      %40 = dma.done [#allocation4], 128
    $region17: #{tpu_custom_call.1} parent=1 // pred_fallthru
      _
    %41 = vsyncpa [#allocation3], 1
    %42 = vsyncpa [#allocation4], 1

</llo_original>
